<compile_context>
chip_gen: v5e
topology: v5e:2x2
jax: 0.10.0
libtpu: 0.0.40
codegen_flags: <defaults>
</compile_context>

<pallas_src>
import functools

import jax
import jax.numpy as jnp
from jax import lax
from jax.experimental import pallas as pl
from jax.experimental.pallas import tpu as pltpu

_LANE = 128


def _row_sums_lane_dense(x, tile_k):
    """Row sums of x:(tile_r, tile_k), returned lane-dense as (1, tile_r) f32.

    ones(1,K) @ x(R,K)^T on the MXU: the per-row sums are born on the lane axis,
    so no (tile_r, 1) column / sublane->lane relayout / masked narrow store ever
    exists. Operands are always bf16 (native MXU path); non-bf16 inputs use an
    exact hi/lo bf16 split (x = hi + lo, both exactly representable) so the f32
    accumulation is accurate to ~2^-18 relative regardless of f32-matmul precision.
    """
    dims = (((1,), (1,)), ((), ()))  # contract both operands on their last dim
    ones = jnp.ones((1, tile_k), jnp.bfloat16)
    if x.dtype == jnp.bfloat16:
        return lax.dot_general(ones, x, dims, preferred_element_type=jnp.float32)
    xf = x.astype(jnp.float32)
    hi = xf.astype(jnp.bfloat16)
    lo = (xf - hi.astype(jnp.float32)).astype(jnp.bfloat16)
    return (lax.dot_general(ones, hi, dims, preferred_element_type=jnp.float32)
            + lax.dot_general(ones, lo, dims, preferred_element_type=jnp.float32))


def _gap_kernel(x_ref, o_ref, acc_ref, *, inv_hw, hw, tile_k, needs_mask):
    # x_ref:  (tile_r, tile_k) input block in VMEM
    # o_ref:  (1, tile_r) lane-dense output block (same block across the k axis)
    # acc_ref:(1, tile_r) f32 accumulator, resident across the reduction axis
    k = pl.program_id(1)

    @pl.when(k == 0)
    def _():
        acc_ref[...] = jnp.zeros_like(acc_ref)

    x = x_ref[...]
    if needs_mask:
        # Zero the lanes past the spatial extent in the final partial reduction
        # tile (the pad region is stale VMEM, possibly NaN, so it must be zeroed
        # *before* the matmul). For non-final tiles the mask is all-true.
        lane = lax.broadcasted_iota(jnp.int32, (1, tile_k), 1)
        x = jnp.where(lane < hw - k * tile_k, x, jnp.zeros_like(x))

    acc_ref[...] += _row_sums_lane_dense(x, tile_k)

    @pl.when(k == pl.num_programs(1) - 1)
    def _():
        o_ref[...] = (acc_ref[...] * inv_hw).astype(o_ref.dtype)


def _pick_tiles(rows, hw, itemsize):
    """Pick (tile_r, tile_k) respecting the (8,128) layout rule and padded VMEM cost."""
    # Reduction-axis tile: largest multiple of 128 (<= 2048) not exceeding hw; the
    # final partial tile is masked in-kernel, so tile_k need not divide hw and DMA
    # rows stay long and contiguous. hw < 128 (e.g. 7x7=49) uses the full extent,
    # the only legal non-multiple-of-128 last block dim.
    if hw < _LANE:
        tile_k = hw
    else:
        tile_k = min(2048, (hw // _LANE) * _LANE)
    padded_k = pl.cdiv(tile_k, _LANE) * _LANE  # lane-padded VMEM footprint

    # Row tile from a padded-footprint budget: ~3x the input tile (double-buffered
    # DMA block + bf16 hi/lo temporaries) plus accumulator/output slop, targeting
    # ~20 MiB total so we sit comfortably under the 32 MiB scoped limit requested
    # below on every generation (v7x physical VMEM is only 64 MiB).
    budget = 20 * 1024 * 1024
    per_row = 3 * padded_k * itemsize + 64
    tile_r = max(_LANE, budget // per_row // _LANE * _LANE)

    if tile_r >= rows:
        tile_r = rows  # full-extent rows is always a legal block dim
    if rows > _LANE:
        # Guarantee >= 2 row tiles so both v7x TensorCores get work (rows is the
        # only "parallel" axis); keep tile_r a multiple of 128 so the lane-dense
        # (1, tile_r) output block stays layout-legal.
        half = pl.cdiv(pl.cdiv(rows, 2), _LANE) * _LANE
        if half < rows:
            tile_r = min(tile_r, half)
    return tile_r, tile_k


def global_avg_pool2d(x):
    """x: (N, C, H, W) -> (N, C); mean over spatial dims (GlobalAvgPool2d.forward)."""
    N, C, H, W = x.shape
    rows, hw = N * C, H * W
    x2d = x.reshape(rows, hw)
    itemsize = x2d.dtype.itemsize

    tile_r, tile_k = _pick_tiles(rows, hw, itemsize)
    grid = (pl.cdiv(rows, tile_r), pl.cdiv(hw, tile_k))
    needs_mask = (hw % tile_k) != 0

    out = pl.pallas_call(
        functools.partial(_gap_kernel, inv_hw=float(1.0 / hw), hw=hw,
                          tile_k=tile_k, needs_mask=needs_mask),
        out_shape=jax.ShapeDtypeStruct((1, rows), x.dtype),
        grid_spec=pltpu.PrefetchScalarGridSpec(
            num_scalar_prefetch=0,
            grid=grid,
            in_specs=[pl.BlockSpec((tile_r, tile_k), lambda i, k: (i, k))],
            out_specs=pl.BlockSpec((1, tile_r), lambda i, k: (0, i)),
            scratch_shapes=[pltpu.VMEM((1, tile_r), jnp.float32)],
        ),
        compiler_params=pltpu.CompilerParams(
            dimension_semantics=("parallel", "arbitrary"),
            vmem_limit_bytes=32 * 1024 * 1024,
        ),
        cost_estimate=pl.CostEstimate(
            flops=2 * rows * hw,
            transcendentals=0,
            bytes_accessed=rows * hw * itemsize + rows * itemsize,
        ),
    )(x2d)

    return out.reshape(N, C)


if __name__ == "__main__":
    key = jax.random.PRNGKey(0)

    # 1) Base case (multiple-of-128 spatial extent, f32, single row tile).
    x = jax.random.normal(key, (2, 4, 16, 16), dtype=jnp.float32)
    y = jax.block_until_ready(global_avg_pool2d(x))
    assert y.shape == (2, 4), y.shape
    assert jnp.allclose(y, jnp.mean(x, axis=(2, 3)), atol=2e-5, rtol=2e-5)

    # 2) Non-multiple-of-128 spatial extent < 128 (7x7 ResNet-head style).
    x2 = jax.random.normal(jax.random.PRNGKey(1), (2, 4, 7, 7), dtype=jnp.float32)
    y2 = jax.block_until_ready(global_avg_pool2d(x2))
    assert jnp.allclose(y2, jnp.mean(x2, axis=(2, 3)), atol=2e-5, rtol=2e-5)

    # 3) hw >= 128 but not a multiple of tile_k -> exercises the in-kernel mask.
    x3 = jax.random.normal(jax.random.PRNGKey(2), (2, 4, 12, 12), dtype=jnp.float32)
    y3 = jax.block_until_ready(global_avg_pool2d(x3))
    assert jnp.allclose(y3, jnp.mean(x3, axis=(2, 3)), atol=2e-5, rtol=2e-5)

    # 4) bf16 inputs take the direct (exact) bf16 MXU path.
    x4 = jax.random.normal(jax.random.PRNGKey(3), (2, 4, 16, 16)).astype(jnp.bfloat16)
    y4 = jax.block_until_ready(global_avg_pool2d(x4))
    ref4 = jnp.mean(x4.astype(jnp.float32), axis=(2, 3))
    assert jnp.allclose(y4.astype(jnp.float32), ref4, atol=1e-2, rtol=1e-2)

    # 5) rows > 128 -> multiple row tiles (>=2 for the v7x parallel axis), partial
    #    final row tile, lane-dense (1, tile_r) output blocks spanning several tiles.
    x5 = jax.random.normal(jax.random.PRNGKey(4), (2, 160, 8, 8), dtype=jnp.float32)
    y5 = jax.block_until_ready(global_avg_pool2d(x5))
    assert y5.shape == (2, 160)
    assert jnp.allclose(y5, jnp.mean(x5, axis=(2, 3)), atol=2e-5, rtol=2e-5)

    print("KERNEL_OK")
</pallas_src>

<mosaic_0001>
module attributes {stable_mosaic.version = 11 : i64} {
  func.func @_gap_kernel(%arg0: i32, %arg1: i32, %arg2: memref<8x256xf32, #tpu.memory_space<vmem>>, %arg3: memref<1x8xf32, #tpu.memory_space<vmem>>, %arg4: memref<1x8xf32, #tpu.memory_space<vmem>>) attributes {dimension_semantics = [#tpu.dimension_semantics<parallel>, #tpu.dimension_semantics<arbitrary>], iteration_bounds = array<i64: 1, 1>, scalar_prefetch = 0 : i64, scratch_operands = 1 : i64, tpu.core_type = #tpu.core_type<tc>, window_params = [{transform_indices = @transform_0, window_bounds = array<i64: 8, 256>}, {transform_indices = @transform_1, window_bounds = array<i64: 1, 8>}]} {
    %c0_i32 = arith.constant 0 : i32
    %0 = arith.cmpi eq, %arg1, %c0_i32 : i32
    %1 = arith.extui %0 : i1 to i32
    %c0_i32_0 = arith.constant 0 : i32
    %2 = arith.cmpi ne, %1, %c0_i32_0 : i32
    scf.if %2 {
      %cst_10 = arith.constant 0.000000e+00 : f32
      %18 = vector.broadcast %cst_10 : f32 to vector<1x8xf32>
      %c0_11 = arith.constant 0 : index
      %c0_12 = arith.constant 0 : index
      %19 = vector.load %arg4[%c0_11, %c0_12] : memref<1x8xf32, #tpu.memory_space<vmem>>, vector<1x8xf32>
      tpu.vector_store %arg4[%c0_11, %c0_12], %18 {strides = array<i32>} : memref<1x8xf32, #tpu.memory_space<vmem>>, vector<1x8xf32>,
    } else {
    }
    %c0 = arith.constant 0 : index
    %c0_1 = arith.constant 0 : index
    %3 = vector.load %arg2[%c0, %c0_1] : memref<8x256xf32, #tpu.memory_space<vmem>>, vector<8x256xf32>
    %c0_2 = arith.constant 0 : index
    %c0_3 = arith.constant 0 : index
    %4 = vector.load %arg4[%c0_2, %c0_3] : memref<1x8xf32, #tpu.memory_space<vmem>>, vector<1x8xf32>
    %cst = arith.constant 1.000000e+00 : bf16
    %5 = vector.broadcast %cst : bf16 to vector<1x256xbf16>
    %6 = arith.truncf %3 : vector<8x256xf32> to vector<8x256xbf16>
    %7 = arith.extf %6 : vector<8x256xbf16> to vector<8x256xf32>
    %8 = arith.subf %3, %7 : vector<8x256xf32>
    %9 = arith.truncf %8 : vector<8x256xf32> to vector<8x256xbf16>
    %cst_4 = arith.constant dense<0.000000e+00> : vector<1x8xf32>
    %10 = tpu.matmul %5, %6, %cst_4 {dimension_numbers = #tpu.dot_dimension_numbers<[1], [1], [0], [0], [0, 0, 1, 0], [], []>} : vector<1x256xbf16>, vector<8x256xbf16>, vector<1x8xf32> -> vector<1x8xf32>
    %cst_5 = arith.constant dense<0.000000e+00> : vector<1x8xf32>
    %11 = tpu.matmul %5, %9, %cst_5 {dimension_numbers = #tpu.dot_dimension_numbers<[1], [1], [0], [0], [0, 0, 1, 0], [], []>} : vector<1x256xbf16>, vector<8x256xbf16>, vector<1x8xf32> -> vector<1x8xf32>
    %12 = arith.addf %10, %11 : vector<1x8xf32>
    %13 = arith.addf %4, %12 : vector<1x8xf32>
    %c0_6 = arith.constant 0 : index
    %c0_7 = arith.constant 0 : index
    %14 = vector.load %arg4[%c0_6, %c0_7] : memref<1x8xf32, #tpu.memory_space<vmem>>, vector<1x8xf32>
    tpu.vector_store %arg4[%c0_6, %c0_7], %13 {strides = array<i32>} : memref<1x8xf32, #tpu.memory_space<vmem>>, vector<1x8xf32>,
    %c0_i32_8 = arith.constant 0 : i32
    %15 = arith.cmpi eq, %arg1, %c0_i32_8 : i32
    %16 = arith.extui %15 : i1 to i32
    %c0_i32_9 = arith.constant 0 : i32
    %17 = arith.cmpi ne, %16, %c0_i32_9 : i32
    scf.if %17 {
      %c0_10 = arith.constant 0 : index
      %c0_11 = arith.constant 0 : index
      %18 = vector.load %arg4[%c0_10, %c0_11] : memref<1x8xf32, #tpu.memory_space<vmem>>, vector<1x8xf32>
      %cst_12 = arith.constant 3.906250e-03 : f32
      %19 = vector.broadcast %cst_12 : f32 to vector<1x8xf32>
      %20 = arith.mulf %18, %19 : vector<1x8xf32>
      %c0_13 = arith.constant 0 : index
      %c0_14 = arith.constant 0 : index
      %21 = vector.load %arg3[%c0_13, %c0_14] : memref<1x8xf32, #tpu.memory_space<vmem>>, vector<1x8xf32>
      tpu.vector_store %arg3[%c0_13, %c0_14], %20 {strides = array<i32>} : memref<1x8xf32, #tpu.memory_space<vmem>>, vector<1x8xf32>,
    } else {
    }
    return
  }
  func.func @transform_0(%arg0: i32, %arg1: i32) -> (i32, i32) {
    %c0_i32 = arith.constant 0 : i32
    return %arg0, %arg1 : i32, i32
  }
  func.func @transform_1(%arg0: i32, %arg1: i32) -> (i32, i32) {
    %c0_i32 = arith.constant 0 : i32
    %c0_i32_0 = arith.constant 0 : i32
    return %c0_i32, %arg0 : i32, i32
  }
}

</mosaic_0001>

<llo_original>
// kernel: tpu_custom_call.1
$region0: #{tpu_custom_call.1}
  #allocation0 [shape = 'u32[]', space=smem, size = 0x4, offset = 0x4, fixed_abs, tag = 'smem constant byte address 0x4 - core index']
  #allocation1 [shape = 'u32[72,128]{1,0:T(1,128)}', space=vmem, size = 0x9000, scoped, tag = 'internal scratch']
  #allocation2 [shape = 'f32[1,8]{1,0:T(1,128)}', space=vmem, size = 0x200, scoped, tag = 'scratch operand']
  %s0 = inlined_call_operand.hbm [shape: f32[8,256], index: 0, kind: input, shape index: {}]
  %s1 = inlined_call_operand.hbm [shape: f32[1,8], index: 1, kind: output, shape index: {}]
  %s2 = sld [smem:[#allocation0]]
  $region26: #{tpu_custom_call.1} parent=0
    _
  %s4 = ssub.s32 1, %s2
  %s5 = scalar_select 0, %s4, %s2
  $region1: #{tpu_custom_call.1} parent=0
    #allocation3 [shape = 'u8[8192]{0}', space=vmem, size = 0x2000, scoped, tag = 'input window, operand 0, single buffered']
    #allocation4 [shape = 's32[1]{0}', space=sflag, size = 0x4, scoped, tag = 'scoped memory for tpu_custom_call.1']
    #allocation5 [shape = 's32[1]{0}', space=sflag, size = 0x4, scoped, tag = 'scoped memory for tpu_custom_call.1']
    #allocation6 [shape = 'u8[512]{0}', space=vmem, size = 0x400, scoped, tag = 'output window, operand 0, single buffered']
    %6 = vsyncpa [#allocation4], 0
    %7 = vsyncpa [#allocation5], 0
    // Predicated region
    $region2: #{tpu_custom_call.1} parent=1 // pred_check
      _
    $region3: #{tpu_custom_call.1} parent=1 // pred_check_branch
      %9 = sbr.rel (0) target = $region5
    $region4: #{tpu_custom_call.1} parent=1 // pred_region
      %11 = vsyncadd [#allocation4], 0
      %s13 = sshll.u32 %s0, 4
      %s14 = int_to_ptr.hbm [resolvable:$true] %s13
      %s15 = sshll.u32 [#allocation3], 4
      %s16 = int_to_ptr.vmem [resolvable:$true] %s15
      %18 = dma.hbm_to_vmem [thread:$0]  %s14, 256, %s16, [#allocation4]
    $region5: #{tpu_custom_call.1} parent=1 // pred_fallthru
      _
    // Predicated region
    $region6: #{tpu_custom_call.1} parent=1 // pred_check
      _
    $region7: #{tpu_custom_call.1} parent=1 // pred_check_branch
      %20 = sbr.rel (0) target = $region9
    $region8: #{tpu_custom_call.1} parent=1 // pred_region
      %22 = dma.done [#allocation4], 256
    $region9: #{tpu_custom_call.1} parent=1 // pred_fallthru
      _
    %p25 = scmp.eq.s32.totalorder 0, 0
    // Predicated region
    $region10: #{tpu_custom_call.1} parent=1 // pred_check
      %p26 = pneg %p25
    $region11: #{tpu_custom_call.1} parent=1 // pred_check_branch
      %28 = sbr.rel (%p26) target = $region13
    $region12: #{tpu_custom_call.1} parent=1 // pred_region
      %vm29 = vcmask 57344
      %30 = vst.msk [vmem:[#allocation2] sm:$0x1] %vm29, 0.0
    $region13: #{tpu_custom_call.1} parent=1 // pred_fallthru
      _
    %v31 = vld [vmem:[#allocation3] sm:$0xff]
    %v32 = vld [vmem:[#allocation3 + $0x8] sm:$0xff]
    %v33 = vld [vmem:[#allocation2] sm:$0x1]
    %v34 = vpack.c.bf16 %v32, %v31
    %v35 = vunpack.c.l.bf16 %v34
    %v36 = vunpack.c.h.bf16 %v34
    %v37 = vsub.f32 %v31, %v35
    %v38 = vsub.f32 %v32, %v36
    %v39 = vpack.c.bf16 %v37, %v37
    %v40 = vpack.c.bf16 %v38, %v38
    %41 = vmatpush.bf16.xpose.msra.mxu0 0
    %42 = vmatpush.bf16.xpose.msra.mxu0 0
    %43 = vmatpush.bf16.xpose.msra.mxu0 0
    %44 = vmatpush.bf16.xpose.msra.mxu0 0
    %45 = vmatpush.bf16.xpose.msra.mxu0 0
    %46 = vmatpush.bf16.xpose.msra.mxu0 0
    %47 = vmatpush.bf16.xpose.msra.mxu0 0
    %48 = vmatpush.bf16.xpose.msra.mxu0 %v39
    %49 = vmatmul.bf16.gmra.mxu0 1065369472
    %v50 = vpop.f32.mrf.mxu0
    %v51 = vadd.f32 0.0, %v50
    %v52 = vpop.f32.mrf.mxu0
    %53 = vdwg.mxu0
    %54 = vmatpush.bf16.xpose.msra.mxu0 0
    %55 = vmatpush.bf16.xpose.msra.mxu0 0
    %56 = vmatpush.bf16.xpose.msra.mxu0 0
    %57 = vmatpush.bf16.xpose.msra.mxu0 0
    %58 = vmatpush.bf16.xpose.msra.mxu0 0
    %59 = vmatpush.bf16.xpose.msra.mxu0 0
    %60 = vmatpush.bf16.xpose.msra.mxu0 0
    %61 = vmatpush.bf16.xpose.msra.mxu0 %v40
    %62 = vmatmul.bf16.gmra.mxu0 1065369472
    %v63 = vpop.f32.mrf.mxu0
    %v64 = vadd.f32 %v51, %v63
    %v65 = vpop.f32.mrf.mxu0
    %66 = vdwg.mxu0
    %v68 = vunpack.c.l.b16 %v34
    %v69 = vunpack.c.h.b16 %v34
    %v70 = vpack.c.b16 %v68, %v68
    %v71 = vpack.c.b16 %v69, %v69
    %74 = vmatpush.bf16.xpose.msra.mxu0 0
    %75 = vmatpush.bf16.xpose.msra.mxu0 0
    %76 = vmatpush.bf16.xpose.msra.mxu0 0
    %77 = vmatpush.bf16.xpose.msra.mxu0 0
    %78 = vmatpush.bf16.xpose.msra.mxu0 0
    %79 = vmatpush.bf16.xpose.msra.mxu0 0
    %80 = vmatpush.bf16.xpose.msra.mxu0 0
    %81 = vmatpush.bf16.xpose.msra.mxu0 %v70
    %82 = vmatmul.bf16.gmra.mxu0 1065369472
    %v83 = vpop.f32.mrf.mxu0
    %v84 = vadd.f32 %v64, %v83
    %v85 = vpop.f32.mrf.mxu0
    %86 = vdwg.mxu0
    %87 = vmatpush.bf16.xpose.msra.mxu0 0
    %88 = vmatpush.bf16.xpose.msra.mxu0 0
    %89 = vmatpush.bf16.xpose.msra.mxu0 0
    %90 = vmatpush.bf16.xpose.msra.mxu0 0
    %91 = vmatpush.bf16.xpose.msra.mxu0 0
    %92 = vmatpush.bf16.xpose.msra.mxu0 0
    %93 = vmatpush.bf16.xpose.msra.mxu0 0
    %94 = vmatpush.bf16.xpose.msra.mxu0 %v71
    %95 = vmatmul.bf16.gmra.mxu0 1065369472
    %v96 = vpop.f32.mrf.mxu0
    %v97 = vadd.f32 %v84, %v96
    %v98 = vpop.f32.mrf.mxu0
    %99 = vdwg.mxu0
    %v100 = vadd.f32 %v33, %v97
    %vm101 = vcmask 57344
    %102 = vst.msk [vmem:[#allocation2] sm:$0x1] %vm101, %v100
    // Predicated region
    $region14: #{tpu_custom_call.1} parent=1 // pred_check
      %p103 = pneg %p25
    $region15: #{tpu_custom_call.1} parent=1 // pred_check_branch
      %105 = sbr.rel (%p103) target = $region17
    $region16: #{tpu_custom_call.1} parent=1 // pred_region
      %v106 = vld [vmem:[#allocation2] sm:$0x1]
      %v107 = vmul.f32 %v106, 0.00390625
      %108 = vst.msk [vmem:[#allocation6] sm:$0x1] %vm101, %v107
    $region17: #{tpu_custom_call.1} parent=1 // pred_fallthru
      _
    // Predicated region
    $region18: #{tpu_custom_call.1} parent=1 // pred_check
      _
    $region19: #{tpu_custom_call.1} parent=1 // pred_check_branch
      %110 = sbr.rel (0) target = $region21
    $region20: #{tpu_custom_call.1} parent=1 // pred_region
      %112 = vsyncadd [#allocation5], 0
      %s114 = sshll.u32 [#allocation6], 4
      %s115 = int_to_ptr.vmem [resolvable:$true] %s114
      %s116 = sshll.u32 %s1, 4
      %s117 = int_to_ptr.hbm [resolvable:$true] %s116
      %119 = dma.vmem_to_hbm [thread:$0]  %s115, 16, %s117, [#allocation5]
    $region21: #{tpu_custom_call.1} parent=1 // pred_fallthru
      _
    // Predicated region
    $region22: #{tpu_custom_call.1} parent=1 // pred_check
      _
    $region23: #{tpu_custom_call.1} parent=1 // pred_check_branch
      %121 = sbr.rel (0) target = $region25
    $region24: #{tpu_custom_call.1} parent=1 // pred_region
      %123 = dma.done [#allocation5], 16
    $region25: #{tpu_custom_call.1} parent=1 // pred_fallthru
      _
    %124 = vsyncpa [#allocation4], 1
    %125 = vsyncpa [#allocation5], 1

</llo_original>
